<compile_context>
chip_gen: v7x
topology: tpu7x:2x2x1
jax: 0.10.0
libtpu: 0.0.40
codegen_flags: <defaults>
</compile_context>

<pallas_src>
import jax
import jax.numpy as jnp
from jax.experimental import pallas as pl
from jax.experimental.pallas import tpu as pltpu

GROUP = 4                 # batch rows packed per lane-dense row (4 * 32 = 128 lanes)
IN_DIM = 7
H1 = 64
H2 = 128
OUT_DIM = 32
PK_IN = GROUP * IN_DIM    # 28
PK_H1 = GROUP * H1        # 256
PK_H2 = GROUP * H2        # 512
PK_OUT = GROUP * OUT_DIM  # 128  (one full vreg lane width -> unmasked stores)
MAX_TBQ = 512             # packed-row tile = 2048 original rows per grid step (sweepable)


def mlp_kernel(x_ref, w1_ref, b1_ref, w2_ref, b2_ref, w3_ref, b3_ref, o_ref):
    # x_ref: (TBQ, 28) f32, weights: bf16 block-diagonal, biases: f32 (tiled x4).
    xb = x_ref[...].astype(jnp.bfloat16)

    # Layer 1: Linear(7->64) x 4 groups, packed as (28 -> 256). ReLU, dropout == identity.
    h = jnp.dot(xb, w1_ref[...], preferred_element_type=jnp.float32)
    h = jnp.maximum(h + b1_ref[...], 0.0)

    # Layer 2: Linear(64->128) x 4 groups, packed as (256 -> 512).
    h = jnp.dot(h.astype(jnp.bfloat16), w2_ref[...], preferred_element_type=jnp.float32)
    h = jnp.maximum(h + b2_ref[...], 0.0)

    # Output layer: Linear(128->32) x 4 groups, packed as (512 -> 128). No activation.
    o = jnp.dot(h.astype(jnp.bfloat16), w3_ref[...], preferred_element_type=jnp.float32)
    o_ref[...] = (o + b3_ref[...]).astype(o_ref.dtype)


def _block_diag4(w):
    """4-way block-diagonal expansion of a (k, n) weight -> (4k, 4n)."""
    k, n = w.shape
    out = jnp.zeros((GROUP * k, GROUP * n), w.dtype)
    for g in range(GROUP):
        out = out.at[g * k:(g + 1) * k, g * n:(g + 1) * n].set(w)
    return out


def feature_extractor(x, params):
    w1, b1, w2, b2, w3, b3 = params
    B = x.shape[0]

    # Pad batch to a multiple of GROUP only when needed (<= 3 rows).
    Bp = ((B + GROUP - 1) // GROUP) * GROUP
    if Bp != B:
        x = jnp.pad(x, ((0, Bp - B), (0, 0)))
    n_rows = Bp // GROUP  # packed rows

    # Free row-major reshape: packed row j = [x[4j], x[4j+1], x[4j+2], x[4j+3]].
    x_packed = x.reshape(n_rows, PK_IN)

    # Block-diagonal weights (bf16 for the MXU); biases tiled 4x along lanes (f32).
    w1p = _block_diag4(w1).astype(jnp.bfloat16)
    w2p = _block_diag4(w2).astype(jnp.bfloat16)
    w3p = _block_diag4(w3).astype(jnp.bfloat16)
    b1p = jnp.tile(b1.reshape(1, H1), (1, GROUP))
    b2p = jnp.tile(b2.reshape(1, H2), (1, GROUP))
    b3p = jnp.tile(b3.reshape(1, OUT_DIM), (1, GROUP))

    if n_rows <= MAX_TBQ:
        tbq = n_rows          # single grid step (avoid per-step overhead on 1-TC chips)
    else:
        tbq = MAX_TBQ         # large batches: big tiles; last block may be partial
    grid = (pl.cdiv(n_rows, tbq),)

    full = lambda i: (0, 0)   # weights / biases: same whole-array block every step
    cost = pl.CostEstimate(
        flops=2 * n_rows * (PK_IN * PK_H1 + PK_H1 * PK_H2 + PK_H2 * PK_OUT),
        transcendentals=0,
        bytes_accessed=n_rows * (PK_IN + PK_OUT) * 4
        + 2 * (PK_IN * PK_H1 + PK_H1 * PK_H2 + PK_H2 * PK_OUT)
        + 4 * (PK_H1 + PK_H2 + PK_OUT),
    )

    out_packed = pl.pallas_call(
        mlp_kernel,
        out_shape=jax.ShapeDtypeStruct((n_rows, PK_OUT), jnp.float32),
        grid=grid,
        in_specs=[
            pl.BlockSpec((tbq, PK_IN), lambda i: (i, 0)),   # packed x tile over batch
            pl.BlockSpec((PK_IN, PK_H1), full),             # W1 block-diag
            pl.BlockSpec((1, PK_H1), full),                 # b1 tiled
            pl.BlockSpec((PK_H1, PK_H2), full),             # W2 block-diag
            pl.BlockSpec((1, PK_H2), full),                 # b2 tiled
            pl.BlockSpec((PK_H2, PK_OUT), full),            # W3 block-diag
            pl.BlockSpec((1, PK_OUT), full),                # b3 tiled
        ],
        out_specs=pl.BlockSpec((tbq, PK_OUT), lambda i: (i, 0)),
        compiler_params=pltpu.CompilerParams(
            dimension_semantics=("parallel",),
            vmem_limit_bytes=32 * 1024 * 1024,
        ),
        cost_estimate=cost,
    )(x_packed, w1p, b1p, w2p, b2p, w3p, b3p)

    # Free row-major reshape back to per-row outputs; drop any batch padding.
    return out_packed.reshape(Bp, OUT_DIM)[:B]


def init_params(key):
    # Mimic nn.Linear default init: U(-1/sqrt(fan_in), 1/sqrt(fan_in)).
    def linear(key, fan_in, fan_out):
        kw, kb = jax.random.split(key)
        bound = 1.0 / jnp.sqrt(fan_in)
        w = jax.random.uniform(kw, (fan_in, fan_out), jnp.float32, -bound, bound)
        b = jax.random.uniform(kb, (1, fan_out), jnp.float32, -bound, bound)
        return w, b

    k1, k2, k3 = jax.random.split(key, 3)
    w1, b1 = linear(k1, IN_DIM, H1)
    w2, b2 = linear(k2, H1, H2)
    w3, b3 = linear(k3, H2, OUT_DIM)
    return w1, b1, w2, b2, w3, b3


def reference(x, params):
    w1, b1, w2, b2, w3, b3 = params
    h = jnp.maximum(x @ w1 + b1, 0.0)
    h = jnp.maximum(h @ w2 + b2, 0.0)
    return h @ w3 + b3


if __name__ == "__main__":
    key = jax.random.PRNGKey(0)
    kx, kp = jax.random.split(key)

    params = init_params(kp)

    # Tolerances loosened vs the pure-f32 version because matmul operands are bf16
    # (f32 accumulation); expected error is ~1e-3 on O(0.1) outputs.
    B = 16
    x = jax.random.normal(kx, (B, IN_DIM), jnp.float32)
    out = jax.block_until_ready(feature_extractor(x, params))
    ref = reference(x, params)
    assert out.shape == (B, OUT_DIM)
    assert jnp.allclose(out, ref, atol=1e-2, rtol=1e-2), "mismatch vs JAX reference"

    # Batch that is NOT a multiple of 4 (exercises the small pad + slice path).
    B2 = 37
    x2 = jax.random.normal(kx, (B2, IN_DIM), jnp.float32)
    out2 = jax.block_until_ready(feature_extractor(x2, params))
    assert out2.shape == (B2, OUT_DIM)
    assert jnp.allclose(out2, reference(x2, params), atol=1e-2, rtol=1e-2)

    print("KERNEL_OK")
</pallas_src>

<mosaic_0001>
module attributes {stable_mosaic.version = 11 : i64} {
  func.func @mlp_kernel(%arg0: i32, %arg1: memref<4x28xf32, #tpu.memory_space<vmem>>, %arg2: memref<28x256xbf16, #tpu.memory_space<vmem>>, %arg3: memref<1x256xf32, #tpu.memory_space<vmem>>, %arg4: memref<256x512xbf16, #tpu.memory_space<vmem>>, %arg5: memref<1x512xf32, #tpu.memory_space<vmem>>, %arg6: memref<512x128xbf16, #tpu.memory_space<vmem>>, %arg7: memref<1x128xf32, #tpu.memory_space<vmem>>, %arg8: memref<4x128xf32, #tpu.memory_space<vmem>>) attributes {dimension_semantics = [#tpu.dimension_semantics<parallel>], iteration_bounds = array<i64: 1>, scalar_prefetch = 0 : i64, scratch_operands = 0 : i64, tpu.core_type = #tpu.core_type<tc>, window_params = [{transform_indices = @transform_0, window_bounds = array<i64: 4, 28>}, {pipeline_mode = #tpu.pipeline_mode<synchronous>, transform_indices = @transform_1, window_bounds = array<i64: 28, 256>}, {pipeline_mode = #tpu.pipeline_mode<synchronous>, transform_indices = @transform_2, window_bounds = array<i64: 1, 256>}, {pipeline_mode = #tpu.pipeline_mode<synchronous>, transform_indices = @transform_3, window_bounds = array<i64: 256, 512>}, {pipeline_mode = #tpu.pipeline_mode<synchronous>, transform_indices = @transform_4, window_bounds = array<i64: 1, 512>}, {pipeline_mode = #tpu.pipeline_mode<synchronous>, transform_indices = @transform_5, window_bounds = array<i64: 512, 128>}, {pipeline_mode = #tpu.pipeline_mode<synchronous>, transform_indices = @transform_6, window_bounds = array<i64: 1, 128>}, {transform_indices = @transform_7, window_bounds = array<i64: 4, 128>}]} {
    %c0 = arith.constant 0 : index
    %c0_0 = arith.constant 0 : index
    %0 = vector.load %arg1[%c0, %c0_0] : memref<4x28xf32, #tpu.memory_space<vmem>>, vector<4x28xf32>
    %1 = arith.truncf %0 : vector<4x28xf32> to vector<4x28xbf16>
    %c0_1 = arith.constant 0 : index
    %c0_2 = arith.constant 0 : index
    %2 = vector.load %arg2[%c0_1, %c0_2] : memref<28x256xbf16, #tpu.memory_space<vmem>>, vector<28x256xbf16>
    %cst = arith.constant dense<0.000000e+00> : vector<4x256xf32>
    %3 = tpu.matmul %1, %2, %cst {dimension_numbers = #tpu.dot_dimension_numbers<[1], [0], [0], [1], [0, 0, 1, 1], [], []>} : vector<4x28xbf16>, vector<28x256xbf16>, vector<4x256xf32> -> vector<4x256xf32>
    %c0_3 = arith.constant 0 : index
    %c0_4 = arith.constant 0 : index
    %4 = vector.load %arg3[%c0_3, %c0_4] : memref<1x256xf32, #tpu.memory_space<vmem>>, vector<1x256xf32>
    %5 = vector.broadcast %4 : vector<1x256xf32> to vector<4x256xf32>
    %6 = arith.addf %3, %5 : vector<4x256xf32>
    %cst_5 = arith.constant 0.000000e+00 : f32
    %7 = vector.broadcast %cst_5 : f32 to vector<4x256xf32>
    %8 = arith.maximumf %6, %7 : vector<4x256xf32>
    %9 = arith.truncf %8 : vector<4x256xf32> to vector<4x256xbf16>
    %c0_6 = arith.constant 0 : index
    %c0_7 = arith.constant 0 : index
    %10 = vector.load %arg4[%c0_6, %c0_7] : memref<256x512xbf16, #tpu.memory_space<vmem>>, vector<256x512xbf16>
    %cst_8 = arith.constant dense<0.000000e+00> : vector<4x512xf32>
    %11 = tpu.matmul %9, %10, %cst_8 {dimension_numbers = #tpu.dot_dimension_numbers<[1], [0], [0], [1], [0, 0, 1, 1], [], []>} : vector<4x256xbf16>, vector<256x512xbf16>, vector<4x512xf32> -> vector<4x512xf32>
    %c0_9 = arith.constant 0 : index
    %c0_10 = arith.constant 0 : index
    %12 = vector.load %arg5[%c0_9, %c0_10] : memref<1x512xf32, #tpu.memory_space<vmem>>, vector<1x512xf32>
    %13 = vector.broadcast %12 : vector<1x512xf32> to vector<4x512xf32>
    %14 = arith.addf %11, %13 : vector<4x512xf32>
    %cst_11 = arith.constant 0.000000e+00 : f32
    %15 = vector.broadcast %cst_11 : f32 to vector<4x512xf32>
    %16 = arith.maximumf %14, %15 : vector<4x512xf32>
    %17 = arith.truncf %16 : vector<4x512xf32> to vector<4x512xbf16>
    %c0_12 = arith.constant 0 : index
    %c0_13 = arith.constant 0 : index
    %18 = vector.load %arg6[%c0_12, %c0_13] : memref<512x128xbf16, #tpu.memory_space<vmem>>, vector<512x128xbf16>
    %cst_14 = arith.constant dense<0.000000e+00> : vector<4x128xf32>
    %19 = tpu.matmul %17, %18, %cst_14 {dimension_numbers = #tpu.dot_dimension_numbers<[1], [0], [0], [1], [0, 0, 1, 1], [], []>} : vector<4x512xbf16>, vector<512x128xbf16>, vector<4x128xf32> -> vector<4x128xf32>
    %c0_15 = arith.constant 0 : index
    %c0_16 = arith.constant 0 : index
    %20 = vector.load %arg7[%c0_15, %c0_16] : memref<1x128xf32, #tpu.memory_space<vmem>>, vector<1x128xf32>
    %21 = vector.broadcast %20 : vector<1x128xf32> to vector<4x128xf32>
    %22 = arith.addf %19, %21 : vector<4x128xf32>
    %c0_17 = arith.constant 0 : index
    %c0_18 = arith.constant 0 : index
    %23 = vector.load %arg8[%c0_17, %c0_18] : memref<4x128xf32, #tpu.memory_space<vmem>>, vector<4x128xf32>
    tpu.vector_store %arg8[%c0_17, %c0_18], %22 {strides = array<i32>} : memref<4x128xf32, #tpu.memory_space<vmem>>, vector<4x128xf32>,
    return
  }
  func.func @transform_0(%arg0: i32) -> (i32, i32) {
    %c0_i32 = arith.constant 0 : i32
    %c0_i32_0 = arith.constant 0 : i32
    return %arg0, %c0_i32 : i32, i32
  }
  func.func @transform_1(%arg0: i32) -> (i32, i32) {
    %c0_i32 = arith.constant 0 : i32
    %c0_i32_0 = arith.constant 0 : i32
    %c0_i32_1 = arith.constant 0 : i32
    return %c0_i32, %c0_i32_0 : i32, i32
  }
  func.func @transform_2(%arg0: i32) -> (i32, i32) {
    %c0_i32 = arith.constant 0 : i32
    %c0_i32_0 = arith.constant 0 : i32
    %c0_i32_1 = arith.constant 0 : i32
    return %c0_i32, %c0_i32_0 : i32, i32
  }
  func.func @transform_3(%arg0: i32) -> (i32, i32) {
    %c0_i32 = arith.constant 0 : i32
    %c0_i32_0 = arith.constant 0 : i32
    %c0_i32_1 = arith.constant 0 : i32
    return %c0_i32, %c0_i32_0 : i32, i32
  }
  func.func @transform_4(%arg0: i32) -> (i32, i32) {
    %c0_i32 = arith.constant 0 : i32
    %c0_i32_0 = arith.constant 0 : i32
    %c0_i32_1 = arith.constant 0 : i32
    return %c0_i32, %c0_i32_0 : i32, i32
  }
  func.func @transform_5(%arg0: i32) -> (i32, i32) {
    %c0_i32 = arith.constant 0 : i32
    %c0_i32_0 = arith.constant 0 : i32
    %c0_i32_1 = arith.constant 0 : i32
    return %c0_i32, %c0_i32_0 : i32, i32
  }
  func.func @transform_6(%arg0: i32) -> (i32, i32) {
    %c0_i32 = arith.constant 0 : i32
    %c0_i32_0 = arith.constant 0 : i32
    %c0_i32_1 = arith.constant 0 : i32
    return %c0_i32, %c0_i32_0 : i32, i32
  }
  func.func @transform_7(%arg0: i32) -> (i32, i32) {
    %c0_i32 = arith.constant 0 : i32
    %c0_i32_0 = arith.constant 0 : i32
    return %arg0, %c0_i32 : i32, i32
  }
}

</mosaic_0001>

<llo_original>
// kernel: tpu_custom_call.1
$region0: #{tpu_custom_call.1}
  #allocation0 [shape = 'u32[]', space=smem, size = 0x4, offset = 0x4, fixed_abs, tag = 'smem constant byte address 0x4 - core index']
  #allocation1 [shape = 'u32[144,128]{1,0:T(1,128)}', space=vmem, size = 0x12000, scoped, tag = 'internal scratch']
  %s0 = inlined_call_operand.hbm [shape: f32[4,28], index: 0, kind: input, shape index: {}]
  %s1 = inlined_call_operand.hbm [shape: bf16[28,256], index: 1, kind: input, shape index: {}]
  %s2 = inlined_call_operand.vmem [shape: f32[1,256], index: 2, kind: input, shape index: {}]
  %s3 = inlined_call_operand.hbm [shape: bf16[256,512], index: 3, kind: input, shape index: {}]
  %s4 = inlined_call_operand.vmem [shape: f32[1,512], index: 4, kind: input, shape index: {}]
  %s5 = inlined_call_operand.hbm [shape: bf16[512,128], index: 5, kind: input, shape index: {}]
  %s6 = inlined_call_operand.vmem [shape: f32[1,128], index: 6, kind: input, shape index: {}]
  %s7 = inlined_call_operand.hbm [shape: f32[4,128], index: 7, kind: output, shape index: {}]
  %s8 = sld [smem:[#allocation0]]
  $region54: #{tpu_custom_call.1} parent=0
    _
  %s10 = ssub.s32 1, %s8
  %s11 = scalar_select 0, %s10, %s8
  $region1: #{tpu_custom_call.1} parent=0
    #allocation2 [shape = 'u8[2048]{0}', space=vmem, size = 0x800, scoped, tag = 'input window, operand 0, single buffered']
    #allocation3 [shape = 's32[1]{0}', space=sflag, size = 0x4, scoped, tag = 'scoped memory for tpu_custom_call.1']
    #allocation4 [shape = 's32[1]{0}', space=sflag, size = 0x4, scoped, tag = 'scoped memory for tpu_custom_call.1']
    #allocation5 [shape = 'u8[16384]{0}', space=vmem, size = 0x4000, scoped, tag = 'input window, operand 1, single buffered']
    #allocation6 [shape = 's32[1]{0}', space=sflag, size = 0x4, scoped, tag = 'scoped memory for tpu_custom_call.1']
    #allocation7 [shape = 'u8[262144]{0}', space=vmem, size = 0x40000, scoped, tag = 'input window, operand 3, single buffered']
    #allocation8 [shape = 'u8[131072]{0}', space=vmem, size = 0x20000, scoped, tag = 'input window, operand 5, single buffered']
    #allocation9 [shape = 's32[1]{0}', space=sflag, size = 0x4, scoped, tag = 'scoped memory for tpu_custom_call.1']
    #allocation10 [shape = 'u8[2048]{0}', space=vmem, size = 0x800, scoped, tag = 'output window, operand 0, single buffered']
    %12 = vsyncpa [#allocation3], 0
    %13 = vsyncpa [#allocation6], 0
    %14 = vsyncpa [#allocation9], 0
    %15 = vsyncpa [#allocation4], 0
    // Predicated region
    $region2: #{tpu_custom_call.1} parent=1 // pred_check
      _
    $region3: #{tpu_custom_call.1} parent=1 // pred_check_branch
      %17 = sbr.rel (0) target = $region5
    $region4: #{tpu_custom_call.1} parent=1 // pred_region
      %s19 = ssub.s32 64, 64
      %20 = vsyncadd [#allocation3], %s19
      %s22 = sshll.u32 [#allocation2], 4
      %s23 = int_to_ptr.vmem [resolvable:$true] %s22
      %25 = dma.hbm_to_vmem [thread:$0]  %s0, 64, %s23, [#allocation3]
    $region5: #{tpu_custom_call.1} parent=1 // pred_fallthru
      _
    // Predicated region
    $region6: #{tpu_custom_call.1} parent=1 // pred_check
      _
    $region7: #{tpu_custom_call.1} parent=1 // pred_check_branch
      %27 = sbr.rel (0) target = $region9
    $region8: #{tpu_custom_call.1} parent=1 // pred_region
      %s29 = ssub.s32 512, 512
      %30 = vsyncadd [#allocation6], %s29
      %s31 = sshll.u32 [#allocation5], 4
      %s32 = int_to_ptr.vmem [resolvable:$true] %s31
      %37 = dma.hbm_to_vmem [thread:$0]  %s1, 512, %s32, [#allocation6], 128, 128, 8
    $region9: #{tpu_custom_call.1} parent=1 // pred_fallthru
      _
    // Predicated region
    $region10: #{tpu_custom_call.1} parent=1 // pred_check
      _
    $region11: #{tpu_custom_call.1} parent=1 // pred_check_branch
      %39 = sbr.rel (0) target = $region13
    $region12: #{tpu_custom_call.1} parent=1 // pred_region
      _
    $region13: #{tpu_custom_call.1} parent=1 // pred_fallthru
      _
    // Predicated region
    $region14: #{tpu_custom_call.1} parent=1 // pred_check
      _
    $region15: #{tpu_custom_call.1} parent=1 // pred_check_branch
      %41 = sbr.rel (0) target = $region17
    $region16: #{tpu_custom_call.1} parent=1 // pred_region
      %s43 = ssub.s32 8192, 8192
      %44 = vsyncadd [#allocation6], %s43
      %s45 = sshll.u32 [#allocation7], 4
      %s46 = int_to_ptr.vmem [resolvable:$true] %s45
      %51 = dma.hbm_to_vmem [thread:$0]  %s3, 8192, %s46, [#allocation6], 256, 256, 16
    $region17: #{tpu_custom_call.1} parent=1 // pred_fallthru
      _
    // Predicated region
    $region18: #{tpu_custom_call.1} parent=1 // pred_check
      _
    $region19: #{tpu_custom_call.1} parent=1 // pred_check_branch
      %53 = sbr.rel (0) target = $region21
    $region20: #{tpu_custom_call.1} parent=1 // pred_region
      _
    $region21: #{tpu_custom_call.1} parent=1 // pred_fallthru
      _
    // Predicated region
    $region22: #{tpu_custom_call.1} parent=1 // pred_check
      _
    $region23: #{tpu_custom_call.1} parent=1 // pred_check_branch
      %55 = sbr.rel (0) target = $region25
    $region24: #{tpu_custom_call.1} parent=1 // pred_region
      %s57 = ssub.s32 4096, 4096
      %58 = vsyncadd [#allocation9], %s57
      %s59 = sshll.u32 [#allocation8], 4
      %s60 = int_to_ptr.vmem [resolvable:$true] %s59
      %65 = dma.hbm_to_vmem [thread:$0]  %s5, 4096, %s60, [#allocation9], 64, 64, 4
    $region25: #{tpu_custom_call.1} parent=1 // pred_fallthru
      _
    // Predicated region
    $region26: #{tpu_custom_call.1} parent=1 // pred_check
      _
    $region27: #{tpu_custom_call.1} parent=1 // pred_check_branch
      %67 = sbr.rel (0) target = $region29
    $region28: #{tpu_custom_call.1} parent=1 // pred_region
      _
    $region29: #{tpu_custom_call.1} parent=1 // pred_fallthru
      _
    // Predicated region
    $region30: #{tpu_custom_call.1} parent=1 // pred_check
      _
    $region31: #{tpu_custom_call.1} parent=1 // pred_check_branch
      %69 = sbr.rel (0) target = $region33
    $region32: #{tpu_custom_call.1} parent=1 // pred_region
      %70 = dma.done [#allocation3], 64
    $region33: #{tpu_custom_call.1} parent=1 // pred_fallthru
      _
    // Predicated region
    $region34: #{tpu_custom_call.1} parent=1 // pred_check
      _
    $region35: #{tpu_custom_call.1} parent=1 // pred_check_branch
      %72 = sbr.rel (0) target = $region37
    $region36: #{tpu_custom_call.1} parent=1 // pred_region
      %73 = dma.done [#allocation6], 512
    $region37: #{tpu_custom_call.1} parent=1 // pred_fallthru
      _
    // Predicated region
    $region38: #{tpu_custom_call.1} parent=1 // pred_check
      _
    $region39: #{tpu_custom_call.1} parent=1 // pred_check_branch
      %75 = sbr.rel (0) target = $region41
    $region40: #{tpu_custom_call.1} parent=1 // pred_region
      %76 = dma.done [#allocation6], 8192
    $region41: #{tpu_custom_call.1} parent=1 // pred_fallthru
      _
    // Predicated region
    $region42: #{tpu_custom_call.1} parent=1 // pred_check
      _
    $region43: #{tpu_custom_call.1} parent=1 // pred_check_branch
      %78 = sbr.rel (0) target = $region45
    $region44: #{tpu_custom_call.1} parent=1 // pred_region
      %79 = dma.done [#allocation9], 4096
    $region45: #{tpu_custom_call.1} parent=1 // pred_fallthru
      _
    %v81 = vld [vmem:[#allocation2] sm:$0xf]
    %v82 = vpack.c.bf16 %v81, %v81
    %v83 = vld [vmem:[#allocation5] sm:$0xff]
    %v84 = vld [vmem:[#allocation5 + $0x8] sm:$0xff]
    %v85 = vld [vmem:[#allocation5 + $0x10] sm:$0xff]
    %v86 = vld [vmem:[#allocation5 + $0x18] sm:$0x33]
    %v87 = vld [vmem:[%s2] sm:$0x3]
    %v89 = vlaneseq
    %v90 = vshrl.u32 %v89, 7
    %v91 = vsub.s32 0, %v90
    %v92 = vrot.slane %v87, %v91
    %v93 = vlaneseq
    %v94 = vshrl.u32 %v93, 7
    %v95 = vsub.s32 1, %v94
    %v96 = vrot.slane %v87, %v95
    %v103 = vunpack.c.l.b16 %v83
    %v104 = vunpack.c.h.b16 %v83
    %v105 = vunpack.c.l.b16 %v84
    %v106 = vunpack.c.h.b16 %v84
    %v107 = vunpack.c.l.b16 %v85
    %v108 = vunpack.c.h.b16 %v85
    %v109 = vunpack.c.l.b16 %v86
    %v110 = vunpack.c.h.b16 %v86
    %v111 = vpack.c.b16 %v105, %v103
    %v112 = vpack.c.b16 %v106, %v104
    %v113 = vpack.c.b16 %v109, %v107
    %v114 = vpack.c.b16 %v110, %v108
    %vm117 = vcmask 228352
    %v119 = vsel %vm117, %v82, 0
    %vm121 = vcmask 1045504
    %v123 = vsel %vm121, %v113, 0
    %v126 = vsel %vm121, %v114, 0
    %128 = vmatprep.subr.bf16.mxu0 %v112
    %129 = vmatpush1.bf16.msra.mxu0 %v111
    %130 = vmatprep.subr.bf16.mxu0 %v126
    %131 = vmatpush1.bf16.msra.mxu0 %v123
    %132 = vmatprep.subr.bf16.mxu0 0
    %133 = vmatpush1.bf16.msra.mxu0 0
    %134 = vmatprep.subr.bf16.mxu0 0
    %135 = vmatpush1.bf16.msra.mxu0 0
    %136 = vmatprep.subr.bf16.mxu0 0
    %137 = vmatpush1.bf16.msra.mxu0 0
    %138 = vmatprep.subr.bf16.mxu0 0
    %139 = vmatpush1.bf16.msra.mxu0 0
    %140 = vmatprep.subr.bf16.mxu0 0
    %141 = vmatpush1.bf16.msra.mxu0 0
    %142 = vmatprep.subr.bf16.mxu0 0
    %143 = vmatpush1.bf16.msra.mxu0 0
    %144 = vmatprep.subr.bf16.mxu0 0
    %145 = vmatpush1.bf16.msra.mxu0 0
    %146 = vmatprep.subr.bf16.mxu0 0
    %147 = vmatpush1.bf16.msra.mxu0 0
    %148 = vmatprep.subr.bf16.mxu0 0
    %149 = vmatpush1.bf16.msra.mxu0 0
    %150 = vmatprep.subr.bf16.mxu0 0
    %151 = vmatpush1.bf16.msra.mxu0 0
    %152 = vmatprep.subr.bf16.mxu0 0
    %153 = vmatpush1.bf16.msra.mxu0 0
    %154 = vmatprep.subr.bf16.mxu0 0
    %155 = vmatpush1.bf16.msra.mxu0 0
    %156 = vmatprep.subr.bf16.mxu0 0
    %157 = vmatpush1.bf16.msra.mxu0 0
    %158 = vmatprep.subr.bf16.mxu0 0
    %159 = vmatpush1.bf16.msra.mxu0 0
    %160 = vmatprep.mubr.bf16.mxu0 0
    %161 = vmatmul.mubr.bf16.gmra.mrb[0].mxu0 %v119
    %v162 = vpop.f32.mrb[0].mxu0
    %v163 = vadd.f32 %v92, %v162
    %v164 = vpop.f32.mrb[0].mxu0
    %v165 = vadd.f32 %v96, %v164
    %v166 = vpop.f32.mrb[0].mxu0
    %v167 = vpop.f32.mrb[0].mxu0
    %168 = vdwg.mxu0
    %v169 = vmax.f32 %v163, 0.0
    %v170 = vmax.f32 %v165, 0.0
    %v171 = vpack.c.bf16 %v169, %v169
    %v172 = vpack.c.bf16 %v170, %v170
    %v173 = vld [vmem:[#allocation7] sm:$0xff]
    %v174 = vld [vmem:[#allocation7 + $0x8] sm:$0xff]
    %v175 = vld [vmem:[#allocation7 + $0x10] sm:$0xff]
    %v176 = vld [vmem:[#allocation7 + $0x18] sm:$0xff]
    %v177 = vld [vmem:[#allocation7 + $0x20] sm:$0xff]
    %v178 = vld [vmem:[#allocation7 + $0x28] sm:$0xff]
    %v179 = vld [vmem:[#allocation7 + $0x30] sm:$0xff]
    %v180 = vld [vmem:[#allocation7 + $0x38] sm:$0xff]
    %v181 = vld [vmem:[#allocation7 + $0x40] sm:$0xff]
    %v182 = vld [vmem:[#allocation7 + $0x48] sm:$0xff]
    %v183 = vld [vmem:[#allocation7 + $0x50] sm:$0xff]
    %v184 = vld [vmem:[#allocation7 + $0x58] sm:$0xff]
    %v185 = vld [vmem:[#allocation7 + $0x60] sm:$0xff]
    %v186 = vld [vmem:[#allocation7 + $0x68] sm:$0xff]
    %v187 = vld [vmem:[#allocation7 + $0x70] sm:$0xff]
    %v188 = vld [vmem:[#allocation7 + $0x78] sm:$0xff]
    %v189 = vld [vmem:[#allocation7 + $0x80] sm:$0xff]
    %v190 = vld [vmem:[#allocation7 + $0x88] sm:$0xff]
    %v191 = vld [vmem:[#allocation7 + $0x90] sm:$0xff]
    %v192 = vld [vmem:[#allocation7 + $0x98] sm:$0xff]
    %v193 = vld [vmem:[#allocation7 + $0xa0] sm:$0xff]
    %v194 = vld [vmem:[#allocation7 + $0xa8] sm:$0xff]
    %v195 = vld [vmem:[#allocation7 + $0xb0] sm:$0xff]
    %v196 = vld [vmem:[#allocation7 + $0xb8] sm:$0xff]
    %v197 = vld [vmem:[#allocation7 + $0xc0] sm:$0xff]
    %v198 = vld [vmem:[#allocation7 + $0xc8] sm:$0xff]
    %v199 = vld [vmem:[#allocation7 + $0xd0] sm:$0xff]
    %v200 = vld [vmem:[#allocation7 + $0xd8] sm:$0xff]
    %v201 = vld [vmem:[#allocation7 + $0xe0] sm:$0xff]
    %v202 = vld [vmem:[#allocation7 + $0xe8] sm:$0xff]
    %v203 = vld [vmem:[#allocation7 + $0xf0] sm:$0xff]
    %v204 = vld [vmem:[#allocation7 + $0xf8] sm:$0xff]
    %v205 = vld [vmem:[#allocation7 + $0x100] sm:$0xff]
    %v206 = vld [vmem:[#allocation7 + $0x108] sm:$0xff]
    %v207 = vld [vmem:[#allocation7 + $0x110] sm:$0xff]
    %v208 = vld [vmem:[#allocation7 + $0x118] sm:$0xff]
    %v209 = vld [vmem:[#allocation7 + $0x120] sm:$0xff]
    %v210 = vld [vmem:[#allocation7 + $0x128] sm:$0xff]
    %v211 = vld [vmem:[#allocation7 + $0x130] sm:$0xff]
    %v212 = vld [vmem:[#allocation7 + $0x138] sm:$0xff]
    %v213 = vld [vmem:[#allocation7 + $0x140] sm:$0xff]
    %v214 = vld [vmem:[#allocation7 + $0x148] sm:$0xff]
    %v215 = vld [vmem:[#allocation7 + $0x150] sm:$0xff]
    %v216 = vld [vmem:[#allocation7 + $0x158] sm:$0xff]
    %v217 = vld [vmem:[#allocation7 + $0x160] sm:$0xff]
    %v218 = vld [vmem:[#allocation7 + $0x168] sm:$0xff]
    %v219 = vld [vmem:[#allocation7 + $0x170] sm:$0xff]
    %v220 = vld [vmem:[#allocation7 + $0x178] sm:$0xff]
    %v221 = vld [vmem:[#allocation7 + $0x180] sm:$0xff]
    %v222 = vld [vmem:[#allocation7 + $0x188] sm:$0xff]
    %v223 = vld [vmem:[#allocation7 + $0x190] sm:$0xff]
    %v224 = vld [vmem:[#allocation7 + $0x198] sm:$0xff]
    %v225 = vld [vmem:[#allocation7 + $0x1a0] sm:$0xff]
    %v226 = vld [vmem:[#allocation7 + $0x1a8] sm:$0xff]
    %v227 = vld [vmem:[#allocation7 + $0x1b0] sm:$0xff]
    %v228 = vld [vmem:[#allocation7 + $0x1b8] sm:$0xff]
    %v229 = vld [vmem:[#allocation7 + $0x1c0] sm:$0xff]
    %v230 = vld [vmem:[#allocation7 + $0x1c8] sm:$0xff]
    %v231 = vld [vmem:[#allocation7 + $0x1d0] sm:$0xff]
    %v232 = vld [vmem:[#allocation7 + $0x1d8] sm:$0xff]
    %v233 = vld [vmem:[#allocation7 + $0x1e0] sm:$0xff]
    %v234 = vld [vmem:[#allocation7 + $0x1e8] sm:$0xff]
    %v235 = vld [vmem:[#allocation7 + $0x1f0] sm:$0xff]
    %v236 = vld [vmem:[#allocation7 + $0x1f8] sm:$0xff]
    %v237 = vld [vmem:[%s4] sm:$0xf]
    %v239 = vlaneseq
    %v240 = vshrl.u32 %v239, 7
    %v241 = vsub.s32 0, %v240
    %v242 = vrot.slane %v237, %v241
    %v243 = vlaneseq
    %v244 = vshrl.u32 %v243, 7
    %v245 = vsub.s32 1, %v244
    %v246 = vrot.slane %v237, %v245
    %v247 = vlaneseq
    %v248 = vshrl.u32 %v247, 7
    %v249 = vsub.s32 2, %v248
    %v250 = vrot.slane %v237, %v249
    %v251 = vlaneseq
    %v252 = vshrl.u32 %v251, 7
    %v253 = vsub.s32 3, %v252
    %v254 = vrot.slane %v237, %v253
    %v323 = vunpack.c.l.b16 %v173
    %v324 = vunpack.c.h.b16 %v173
    %v325 = vunpack.c.l.b16 %v174
    %v326 = vunpack.c.h.b16 %v174
    %v327 = vunpack.c.l.b16 %v175
    %v328 = vunpack.c.h.b16 %v175
    %v329 = vunpack.c.l.b16 %v176
    %v330 = vunpack.c.h.b16 %v176
    %v331 = vunpack.c.l.b16 %v177
    %v332 = vunpack.c.h.b16 %v177
    %v333 = vunpack.c.l.b16 %v178
    %v334 = vunpack.c.h.b16 %v178
    %v335 = vunpack.c.l.b16 %v179
    %v336 = vunpack.c.h.b16 %v179
    %v337 = vunpack.c.l.b16 %v180
    %v338 = vunpack.c.h.b16 %v180
    %v339 = vunpack.c.l.b16 %v181
    %v340 = vunpack.c.h.b16 %v181
    %v341 = vunpack.c.l.b16 %v182
    %v342 = vunpack.c.h.b16 %v182
    %v343 = vunpack.c.l.b16 %v183
    %v344 = vunpack.c.h.b16 %v183
    %v345 = vunpack.c.l.b16 %v184
    %v346 = vunpack.c.h.b16 %v184
    %v347 = vunpack.c.l.b16 %v185
    %v348 = vunpack.c.h.b16 %v185
    %v349 = vunpack.c.l.b16 %v186
    %v350 = vunpack.c.h.b16 %v186
    %v351 = vunpack.c.l.b16 %v187
    %v352 = vunpack.c.h.b16 %v187
    %v353 = vunpack.c.l.b16 %v188
    %v354 = vunpack.c.h.b16 %v188
    %v355 = vunpack.c.l.b16 %v189
    %v356 = vunpack.c.h.b16 %v189
    %v357 = vunpack.c.l.b16 %v190
    %v358 = vunpack.c.h.b16 %v190
    %v359 = vunpack.c.l.b16 %v191
    %v360 = vunpack.c.h.b16 %v191
    %v361 = vunpack.c.l.b16 %v192
    %v362 = vunpack.c.h.b16 %v192
    %v363 = vunpack.c.l.b16 %v193
    %v364 = vunpack.c.h.b16 %v193
    %v365 = vunpack.c.l.b16 %v194
    %v366 = vunpack.c.h.b16 %v194
    %v367 = vunpack.c.l.b16 %v195
    %v368 = vunpack.c.h.b16 %v195
    %v369 = vunpack.c.l.b16 %v196
    %v370 = vunpack.c.h.b16 %v196
    %v371 = vunpack.c.l.b16 %v197
    %v372 = vunpack.c.h.b16 %v197
    %v373 = vunpack.c.l.b16 %v198
    %v374 = vunpack.c.h.b16 %v198
    %v375 = vunpack.c.l.b16 %v199
    %v376 = vunpack.c.h.b16 %v199
    %v377 = vunpack.c.l.b16 %v200
    %v378 = vunpack.c.h.b16 %v200
    %v379 = vunpack.c.l.b16 %v201
    %v380 = vunpack.c.h.b16 %v201
    %v381 = vunpack.c.l.b16 %v202
    %v382 = vunpack.c.h.b16 %v202
    %v383 = vunpack.c.l.b16 %v203
    %v384 = vunpack.c.h.b16 %v203
    %v385 = vunpack.c.l.b16 %v204
    %v386 = vunpack.c.h.b16 %v204
    %v387 = vunpack.c.l.b16 %v205
    %v388 = vunpack.c.h.b16 %v205
    %v389 = vunpack.c.l.b16 %v206
    %v390 = vunpack.c.h.b16 %v206
    %v391 = vunpack.c.l.b16 %v207
    %v392 = vunpack.c.h.b16 %v207
    %v393 = vunpack.c.l.b16 %v208
    %v394 = vunpack.c.h.b16 %v208
    %v395 = vunpack.c.l.b16 %v209
    %v396 = vunpack.c.h.b16 %v209
    %v397 = vunpack.c.l.b16 %v210
    %v398 = vunpack.c.h.b16 %v210
    %v399 = vunpack.c.l.b16 %v211
    %v400 = vunpack.c.h.b16 %v211
    %v401 = vunpack.c.l.b16 %v212
    %v402 = vunpack.c.h.b16 %v212
    %v403 = vunpack.c.l.b16 %v213
    %v404 = vunpack.c.h.b16 %v213
    %v405 = vunpack.c.l.b16 %v214
    %v406 = vunpack.c.h.b16 %v214
    %v407 = vunpack.c.l.b16 %v215
    %v408 = vunpack.c.h.b16 %v215
    %v409 = vunpack.c.l.b16 %v216
    %v410 = vunpack.c.h.b16 %v216
    %v411 = vunpack.c.l.b16 %v217
    %v412 = vunpack.c.h.b16 %v217
    %v413 = vunpack.c.l.b16 %v218
    %v414 = vunpack.c.h.b16 %v218
    %v415 = vunpack.c.l.b16 %v219
    %v416 = vunpack.c.h.b16 %v219
    %v417 = vunpack.c.l.b16 %v220
    %v418 = vunpack.c.h.b16 %v220
    %v419 = vunpack.c.l.b16 %v221
    %v420 = vunpack.c.h.b16 %v221
    %v421 = vunpack.c.l.b16 %v222
    %v422 = vunpack.c.h.b16 %v222
    %v423 = vunpack.c.l.b16 %v223
    %v424 = vunpack.c.h.b16 %v223
    %v425 = vunpack.c.l.b16 %v224
    %v426 = vunpack.c.h.b16 %v224
    %v427 = vunpack.c.l.b16 %v225
    %v428 = vunpack.c.h.b16 %v225
    %v429 = vunpack.c.l.b16 %v226
    %v430 = vunpack.c.h.b16 %v226
    %v431 = vunpack.c.l.b16 %v227
    %v432 = vunpack.c.h.b16 %v227
    %v433 = vunpack.c.l.b16 %v228
    %v434 = vunpack.c.h.b16 %v228
    %v435 = vunpack.c.l.b16 %v229
    %v436 = vunpack.c.h.b16 %v229
    %v437 = vunpack.c.l.b16 %v230
    %v438 = vunpack.c.h.b16 %v230
    %v439 = vunpack.c.l.b16 %v231
    %v440 = vunpack.c.h.b16 %v231
    %v441 = vunpack.c.l.b16 %v232
    %v442 = vunpack.c.h.b16 %v232
    %v443 = vunpack.c.l.b16 %v233
    %v444 = vunpack.c.h.b16 %v233
    %v445 = vunpack.c.l.b16 %v234
    %v446 = vunpack.c.h.b16 %v234
    %v447 = vunpack.c.l.b16 %v235
    %v448 = vunpack.c.h.b16 %v235
    %v449 = vunpack.c.l.b16 %v236
    %v450 = vunpack.c.h.b16 %v236
    %v451 = vpack.c.b16 %v327, %v323
    %v452 = vpack.c.b16 %v328, %v324
    %v453 = vpack.c.b16 %v329, %v325
    %v454 = vpack.c.b16 %v330, %v326
    %v455 = vpack.c.b16 %v335, %v331
    %v456 = vpack.c.b16 %v336, %v332
    %v457 = vpack.c.b16 %v337, %v333
    %v458 = vpack.c.b16 %v338, %v334
    %v459 = vpack.c.b16 %v343, %v339
    %v460 = vpack.c.b16 %v344, %v340
    %v461 = vpack.c.b16 %v345, %v341
    %v462 = vpack.c.b16 %v346, %v342
    %v463 = vpack.c.b16 %v351, %v347
    %v464 = vpack.c.b16 %v352, %v348
    %v465 = vpack.c.b16 %v353, %v349
    %v466 = vpack.c.b16 %v354, %v350
    %v467 = vpack.c.b16 %v359, %v355
    %v468 = vpack.c.b16 %v360, %v356
    %v469 = vpack.c.b16 %v361, %v357
    %v470 = vpack.c.b16 %v362, %v358
    %v471 = vpack.c.b16 %v367, %v363
    %v472 = vpack.c.b16 %v368, %v364
    %v473 = vpack.c.b16 %v369, %v365
    %v474 = vpack.c.b16 %v370, %v366
    %v475 = vpack.c.b16 %v375, %v371
    %v476 = vpack.c.b16 %v376, %v372
    %v477 = vpack.c.b16 %v377, %v373
    %v478 = vpack.c.b16 %v378, %v374
    %v479 = vpack.c.b16 %v383, %v379
    %v480 = vpack.c.b16 %v384, %v380
    %v481 = vpack.c.b16 %v385, %v381
    %v482 = vpack.c.b16 %v386, %v382
    %v483 = vpack.c.b16 %v391, %v387
    %v484 = vpack.c.b16 %v392, %v388
    %v485 = vpack.c.b16 %v393, %v389
    %v486 = vpack.c.b16 %v394, %v390
    %v487 = vpack.c.b16 %v399, %v395
    %v488 = vpack.c.b16 %v400, %v396
    %v489 = vpack.c.b16 %v401, %v397
    %v490 = vpack.c.b16 %v402, %v398
    %v491 = vpack.c.b16 %v407, %v403
    %v492 = vpack.c.b16 %v408, %v404
    %v493 = vpack.c.b16 %v409, %v405
    %v494 = vpack.c.b16 %v410, %v406
    %v495 = vpack.c.b16 %v415, %v411
    %v496 = vpack.c.b16 %v416, %v412
    %v497 = vpack.c.b16 %v417, %v413
    %v498 = vpack.c.b16 %v418, %v414
    %v499 = vpack.c.b16 %v423, %v419
    %v500 = vpack.c.b16 %v424, %v420
    %v501 = vpack.c.b16 %v425, %v421
    %v502 = vpack.c.b16 %v426, %v422
    %v503 = vpack.c.b16 %v431, %v427
    %v504 = vpack.c.b16 %v432, %v428
    %v505 = vpack.c.b16 %v433, %v429
    %v506 = vpack.c.b16 %v434, %v430
    %v507 = vpack.c.b16 %v439, %v435
    %v508 = vpack.c.b16 %v440, %v436
    %v509 = vpack.c.b16 %v441, %v437
    %v510 = vpack.c.b16 %v442, %v438
    %v511 = vpack.c.b16 %v447, %v443
    %v512 = vpack.c.b16 %v448, %v444
    %v513 = vpack.c.b16 %v449, %v445
    %v514 = vpack.c.b16 %v450, %v446
    %579 = vmatprep.subr.bf16.mxu0 %v452
    %580 = vmatpush1.bf16.msra.mxu0 %v451
    %581 = vmatprep.subr.bf16.mxu0 %v456
    %582 = vmatpush1.bf16.msra.mxu0 %v455
    %583 = vmatprep.subr.bf16.mxu0 %v460
    %584 = vmatpush1.bf16.msra.mxu0 %v459
    %585 = vmatprep.subr.bf16.mxu0 %v464
    %586 = vmatpush1.bf16.msra.mxu0 %v463
    %587 = vmatprep.subr.bf16.mxu0 %v468
    %588 = vmatpush1.bf16.msra.mxu0 %v467
    %589 = vmatprep.subr.bf16.mxu0 %v472
    %590 = vmatpush1.bf16.msra.mxu0 %v471
    %591 = vmatprep.subr.bf16.mxu0 %v476
    %592 = vmatpush1.bf16.msra.mxu0 %v475
    %593 = vmatprep.subr.bf16.mxu0 %v480
    %594 = vmatpush1.bf16.msra.mxu0 %v479
    %595 = vmatprep.subr.bf16.mxu0 %v484
    %596 = vmatpush1.bf16.msra.mxu0 %v483
    %597 = vmatprep.subr.bf16.mxu0 %v488
    %598 = vmatpush1.bf16.msra.mxu0 %v487
    %599 = vmatprep.subr.bf16.mxu0 %v492
    %600 = vmatpush1.bf16.msra.mxu0 %v491
    %601 = vmatprep.subr.bf16.mxu0 %v496
    %602 = vmatpush1.bf16.msra.mxu0 %v495
    %603 = vmatprep.subr.bf16.mxu0 %v500
    %604 = vmatpush1.bf16.msra.mxu0 %v499
    %605 = vmatprep.subr.bf16.mxu0 %v504
    %606 = vmatpush1.bf16.msra.mxu0 %v503
    %607 = vmatprep.subr.bf16.mxu0 %v508
    %608 = vmatpush1.bf16.msra.mxu0 %v507
    %609 = vmatprep.subr.bf16.mxu0 %v512
    %610 = vmatpush1.bf16.msra.mxu0 %v511
    %611 = vmatprep.mubr.bf16.mxu0 %v172
    %612 = vmatmul.mubr.bf16.gmra.mrb[0].mxu0 %v171
    %v613 = vpop.f32.mrb[0].mxu0
    %v614 = vadd.f32 %v242, %v613
    %v615 = vpop.f32.mrb[0].mxu0
    %v616 = vadd.f32 %v246, %v615
    %v617 = vpop.f32.mrb[0].mxu0
    %v618 = vpop.f32.mrb[0].mxu0
    %619 = vdwg.mxu0
    %620 = vmatprep.subr.bf16.mxu0 %v454
    %621 = vmatpush1.bf16.msra.mxu0 %v453
    %622 = vmatprep.subr.bf16.mxu0 %v458
    %623 = vmatpush1.bf16.msra.mxu0 %v457
    %624 = vmatprep.subr.bf16.mxu0 %v462
    %625 = vmatpush1.bf16.msra.mxu0 %v461
    %626 = vmatprep.subr.bf16.mxu0 %v466
    %627 = vmatpush1.bf16.msra.mxu0 %v465
    %628 = vmatprep.subr.bf16.mxu0 %v470
    %629 = vmatpush1.bf16.msra.mxu0 %v469
    %630 = vmatprep.subr.bf16.mxu0 %v474
    %631 = vmatpush1.bf16.msra.mxu0 %v473
    %632 = vmatprep.subr.bf16.mxu0 %v478
    %633 = vmatpush1.bf16.msra.mxu0 %v477
    %634 = vmatprep.subr.bf16.mxu0 %v482
    %635 = vmatpush1.bf16.msra.mxu0 %v481
    %636 = vmatprep.subr.bf16.mxu0 %v486
    %637 = vmatpush1.bf16.msra.mxu0 %v485
    %638 = vmatprep.subr.bf16.mxu0 %v490
    %639 = vmatpush1.bf16.msra.mxu0 %v489
    %640 = vmatprep.subr.bf16.mxu0 %v494
    %641 = vmatpush1.bf16.msra.mxu0 %v493
    %642 = vmatprep.subr.bf16.mxu0 %v498
    %643 = vmatpush1.bf16.msra.mxu0 %v497
    %644 = vmatprep.subr.bf16.mxu0 %v502
    %645 = vmatpush1.bf16.msra.mxu0 %v501
    %646 = vmatprep.subr.bf16.mxu0 %v506
    %647 = vmatpush1.bf16.msra.mxu0 %v505
    %648 = vmatprep.subr.bf16.mxu0 %v510
    %649 = vmatpush1.bf16.msra.mxu0 %v509
    %650 = vmatprep.subr.bf16.mxu0 %v514
    %651 = vmatpush1.bf16.msra.mxu0 %v513
    %652 = vmatprep.mubr.bf16.mxu0 %v172
    %653 = vmatmul.mubr.bf16.gmra.mrb[0].mxu0 %v171
    %v654 = vpop.f32.mrb[0].mxu0
    %v655 = vadd.f32 %v250, %v654
    %v656 = vpop.f32.mrb[0].mxu0
    %v657 = vadd.f32 %v254, %v656
    %v658 = vpop.f32.mrb[0].mxu0
    %v659 = vpop.f32.mrb[0].mxu0
    %660 = vdwg.mxu0
    %v661 = vmax.f32 %v614, 0.0
    %v662 = vmax.f32 %v616, 0.0
    %v663 = vmax.f32 %v655, 0.0
    %v664 = vmax.f32 %v657, 0.0
    %v665 = vpack.c.bf16 %v661, %v661
    %v666 = vpack.c.bf16 %v662, %v662
    %v667 = vpack.c.bf16 %v663, %v663
    %v668 = vpack.c.bf16 %v664, %v664
    %v669 = vld [vmem:[#allocation8] sm:$0xf]
    %v670 = vld [vmem:[#allocation8 + $0x4] sm:$0xf]
    %v671 = vld [vmem:[#allocation8 + $0x8] sm:$0xf]
    %v672 = vld [vmem:[#allocation8 + $0xc] sm:$0xf]
    %v673 = vld [vmem:[#allocation8 + $0x10] sm:$0xf]
    %v674 = vld [vmem:[#allocation8 + $0x14] sm:$0xf]
    %v675 = vld [vmem:[#allocation8 + $0x18] sm:$0xf]
    %v676 = vld [vmem:[#allocation8 + $0x1c] sm:$0xf]
    %v677 = vld [vmem:[#allocation8 + $0x20] sm:$0xf]
    %v678 = vld [vmem:[#allocation8 + $0x24] sm:$0xf]
    %v679 = vld [vmem:[#allocation8 + $0x28] sm:$0xf]
    %v680 = vld [vmem:[#allocation8 + $0x2c] sm:$0xf]
    %v681 = vld [vmem:[#allocation8 + $0x30] sm:$0xf]
    %v682 = vld [vmem:[#allocation8 + $0x34] sm:$0xf]
    %v683 = vld [vmem:[#allocation8 + $0x38] sm:$0xf]
    %v684 = vld [vmem:[#allocation8 + $0x3c] sm:$0xf]
    %v685 = vld [vmem:[#allocation8 + $0x40] sm:$0xf]
    %v686 = vld [vmem:[#allocation8 + $0x44] sm:$0xf]
    %v687 = vld [vmem:[#allocation8 + $0x48] sm:$0xf]
    %v688 = vld [vmem:[#allocation8 + $0x4c] sm:$0xf]
    %v689 = vld [vmem:[#allocation8 + $0x50] sm:$0xf]
    %v690 = vld [vmem:[#allocation8 + $0x54] sm:$0xf]
    %v691 = vld [vmem:[#allocation8 + $0x58] sm:$0xf]
    %v692 = vld [vmem:[#allocation8 + $0x5c] sm:$0xf]
    %v693 = vld [vmem:[#allocation8 + $0x60] sm:$0xf]
    %v694 = vld [vmem:[#allocation8 + $0x64] sm:$0xf]
    %v695 = vld [vmem:[#allocation8 + $0x68] sm:$0xf]
    %v696 = vld [vmem:[#allocation8 + $0x6c] sm:$0xf]
    %v697 = vld [vmem:[#allocation8 + $0x70] sm:$0xf]
    %v698 = vld [vmem:[#allocation8 + $0x74] sm:$0xf]
    %v699 = vld [vmem:[#allocation8 + $0x78] sm:$0xf]
    %v700 = vld [vmem:[#allocation8 + $0x7c] sm:$0xf]
    %v701 = vld [vmem:[#allocation8 + $0x80] sm:$0xf]
    %v702 = vld [vmem:[#allocation8 + $0x84] sm:$0xf]
    %v703 = vld [vmem:[#allocation8 + $0x88] sm:$0xf]
    %v704 = vld [vmem:[#allocation8 + $0x8c] sm:$0xf]
    %v705 = vld [vmem:[#allocation8 + $0x90] sm:$0xf]
    %v706 = vld [vmem:[#allocation8 + $0x94] sm:$0xf]
    %v707 = vld [vmem:[#allocation8 + $0x98] sm:$0xf]
    %v708 = vld [vmem:[#allocation8 + $0x9c] sm:$0xf]
    %v709 = vld [vmem:[#allocation8 + $0xa0] sm:$0xf]
    %v710 = vld [vmem:[#allocation8 + $0xa4] sm:$0xf]
    %v711 = vld [vmem:[#allocation8 + $0xa8] sm:$0xf]
    %v712 = vld [vmem:[#allocation8 + $0xac] sm:$0xf]
    %v713 = vld [vmem:[#allocation8 + $0xb0] sm:$0xf]
    %v714 = vld [vmem:[#allocation8 + $0xb4] sm:$0xf]
    %v715 = vld [vmem:[#allocation8 + $0xb8] sm:$0xf]
    %v716 = vld [vmem:[#allocation8 + $0xbc] sm:$0xf]
    %v717 = vld [vmem:[#allocation8 + $0xc0] sm:$0xf]
    %v718 = vld [vmem:[#allocation8 + $0xc4] sm:$0xf]
    %v719 = vld [vmem:[#allocation8 + $0xc8] sm:$0xf]
    %v720 = vld [vmem:[#allocation8 + $0xcc] sm:$0xf]
    %v721 = vld [vmem:[#allocation8 + $0xd0] sm:$0xf]
    %v722 = vld [vmem:[#allocation8 + $0xd4] sm:$0xf]
    %v723 = vld [vmem:[#allocation8 + $0xd8] sm:$0xf]
    %v724 = vld [vmem:[#allocation8 + $0xdc] sm:$0xf]
    %v725 = vld [vmem:[#allocation8 + $0xe0] sm:$0xf]
    %v726 = vld [vmem:[#allocation8 + $0xe4] sm:$0xf]
    %v727 = vld [vmem:[#allocation8 + $0xe8] sm:$0xf]
    %v728 = vld [vmem:[#allocation8 + $0xec] sm:$0xf]
    %v729 = vld [vmem:[#allocation8 + $0xf0] sm:$0xf]
    %v730 = vld [vmem:[#allocation8 + $0xf4] sm:$0xf]
    %v731 = vld [vmem:[#allocation8 + $0xf8] sm:$0xf]
    %v732 = vld [vmem:[#allocation8 + $0xfc] sm:$0xf]
    %v733 = vld [vmem:[%s6] sm:$0x1]
    %v735 = vlaneseq
    %v736 = vshrl.u32 %v735, 7
    %v737 = vsub.s32 0, %v736
    %v738 = vrot.slane %v733, %v737
    %v804 = vunpack.c.l.b16 %v669
    %v805 = vunpack.c.l.b16 %v670
    %v806 = vunpack.c.l.b16 %v671
    %v807 = vunpack.c.l.b16 %v672
    %v808 = vunpack.c.l.b16 %v673
    %v809 = vunpack.c.l.b16 %v674
    %v810 = vunpack.c.l.b16 %v675
    %v811 = vunpack.c.l.b16 %v676
    %v812 = vunpack.c.l.b16 %v677
    %v813 = vunpack.c.l.b16 %v678
    %v814 = vunpack.c.l.b16 %v679
    %v815 = vunpack.c.l.b16 %v680
    %v816 = vunpack.c.l.b16 %v681
    %v817 = vunpack.c.l.b16 %v682
    %v818 = vunpack.c.l.b16 %v683
    %v819 = vunpack.c.l.b16 %v684
    %v820 = vunpack.c.l.b16 %v685
    %v821 = vunpack.c.l.b16 %v686
    %v822 = vunpack.c.l.b16 %v687
    %v823 = vunpack.c.l.b16 %v688
    %v824 = vunpack.c.l.b16 %v689
    %v825 = vunpack.c.l.b16 %v690
    %v826 = vunpack.c.l.b16 %v691
    %v827 = vunpack.c.l.b16 %v692
    %v828 = vunpack.c.l.b16 %v693
    %v829 = vunpack.c.l.b16 %v694
    %v830 = vunpack.c.l.b16 %v695
    %v831 = vunpack.c.l.b16 %v696
    %v832 = vunpack.c.l.b16 %v697
    %v833 = vunpack.c.l.b16 %v698
    %v834 = vunpack.c.l.b16 %v699
    %v835 = vunpack.c.l.b16 %v700
    %v836 = vunpack.c.l.b16 %v701
    %v837 = vunpack.c.l.b16 %v702
    %v838 = vunpack.c.l.b16 %v703
    %v839 = vunpack.c.l.b16 %v704
    %v840 = vunpack.c.l.b16 %v705
    %v841 = vunpack.c.l.b16 %v706
    %v842 = vunpack.c.l.b16 %v707
    %v843 = vunpack.c.l.b16 %v708
    %v844 = vunpack.c.l.b16 %v709
    %v845 = vunpack.c.l.b16 %v710
    %v846 = vunpack.c.l.b16 %v711
    %v847 = vunpack.c.l.b16 %v712
    %v848 = vunpack.c.l.b16 %v713
    %v849 = vunpack.c.l.b16 %v714
    %v850 = vunpack.c.l.b16 %v715
    %v851 = vunpack.c.l.b16 %v716
    %v852 = vunpack.c.l.b16 %v717
    %v853 = vunpack.c.l.b16 %v718
    %v854 = vunpack.c.l.b16 %v719
    %v855 = vunpack.c.l.b16 %v720
    %v856 = vunpack.c.l.b16 %v721
    %v857 = vunpack.c.l.b16 %v722
    %v858 = vunpack.c.l.b16 %v723
    %v859 = vunpack.c.l.b16 %v724
    %v860 = vunpack.c.l.b16 %v725
    %v861 = vunpack.c.l.b16 %v726
    %v862 = vunpack.c.l.b16 %v727
    %v863 = vunpack.c.l.b16 %v728
    %v864 = vunpack.c.l.b16 %v729
    %v865 = vunpack.c.l.b16 %v730
    %v866 = vunpack.c.l.b16 %v731
    %v867 = vunpack.c.l.b16 %v732
    %v868 = vpack.c.b16 %v805, %v804
    %v869 = vpack.c.b16 %v807, %v806
    %v870 = vpack.c.b16 %v809, %v808
    %v871 = vpack.c.b16 %v811, %v810
    %v872 = vpack.c.b16 %v813, %v812
    %v873 = vpack.c.b16 %v815, %v814
    %v874 = vpack.c.b16 %v817, %v816
    %v875 = vpack.c.b16 %v819, %v818
    %v876 = vpack.c.b16 %v821, %v820
    %v877 = vpack.c.b16 %v823, %v822
    %v878 = vpack.c.b16 %v825, %v824
    %v879 = vpack.c.b16 %v827, %v826
    %v880 = vpack.c.b16 %v829, %v828
    %v881 = vpack.c.b16 %v831, %v830
    %v882 = vpack.c.b16 %v833, %v832
    %v883 = vpack.c.b16 %v835, %v834
    %v884 = vpack.c.b16 %v837, %v836
    %v885 = vpack.c.b16 %v839, %v838
    %v886 = vpack.c.b16 %v841, %v840
    %v887 = vpack.c.b16 %v843, %v842
    %v888 = vpack.c.b16 %v845, %v844
    %v889 = vpack.c.b16 %v847, %v846
    %v890 = vpack.c.b16 %v849, %v848
    %v891 = vpack.c.b16 %v851, %v850
    %v892 = vpack.c.b16 %v853, %v852
    %v893 = vpack.c.b16 %v855, %v854
    %v894 = vpack.c.b16 %v857, %v856
    %v895 = vpack.c.b16 %v859, %v858
    %v896 = vpack.c.b16 %v861, %v860
    %v897 = vpack.c.b16 %v863, %v862
    %v898 = vpack.c.b16 %v865, %v864
    %v899 = vpack.c.b16 %v867, %v866
    %932 = vmatprep.subr.bf16.mxu0 0
    %933 = vmatpush1.bf16.msra.mxu0 %v868
    %934 = vmatprep.subr.bf16.mxu0 0
    %935 = vmatpush1.bf16.msra.mxu0 %v869
    %936 = vmatprep.subr.bf16.mxu0 0
    %937 = vmatpush1.bf16.msra.mxu0 %v870
    %938 = vmatprep.subr.bf16.mxu0 0
    %939 = vmatpush1.bf16.msra.mxu0 %v871
    %940 = vmatprep.subr.bf16.mxu0 0
    %941 = vmatpush1.bf16.msra.mxu0 %v872
    %942 = vmatprep.subr.bf16.mxu0 0
    %943 = vmatpush1.bf16.msra.mxu0 %v873
    %944 = vmatprep.subr.bf16.mxu0 0
    %945 = vmatpush1.bf16.msra.mxu0 %v874
    %946 = vmatprep.subr.bf16.mxu0 0
    %947 = vmatpush1.bf16.msra.mxu0 %v875
    %948 = vmatprep.subr.bf16.mxu0 0
    %949 = vmatpush1.bf16.msra.mxu0 %v876
    %950 = vmatprep.subr.bf16.mxu0 0
    %951 = vmatpush1.bf16.msra.mxu0 %v877
    %952 = vmatprep.subr.bf16.mxu0 0
    %953 = vmatpush1.bf16.msra.mxu0 %v878
    %954 = vmatprep.subr.bf16.mxu0 0
    %955 = vmatpush1.bf16.msra.mxu0 %v879
    %956 = vmatprep.subr.bf16.mxu0 0
    %957 = vmatpush1.bf16.msra.mxu0 %v880
    %958 = vmatprep.subr.bf16.mxu0 0
    %959 = vmatpush1.bf16.msra.mxu0 %v881
    %960 = vmatprep.subr.bf16.mxu0 0
    %961 = vmatpush1.bf16.msra.mxu0 %v882
    %962 = vmatprep.subr.bf16.mxu0 0
    %963 = vmatpush1.bf16.msra.mxu0 %v883
    %964 = vmatprep.mubr.bf16.mxu0 %v666
    %965 = vmatmul.mubr.bf16.gmra.mrb[0].mxu0 %v665
    %v966 = vpop.f32.mrb[0].mxu0
    %v967 = vadd.f32 %v738, %v966
    %v968 = vpop.f32.mrb[0].mxu0
    %v969 = vpop.f32.mrb[0].mxu0
    %v970 = vpop.f32.mrb[0].mxu0
    %971 = vdwg.mxu0
    %972 = vmatprep.subr.bf16.mxu0 0
    %973 = vmatpush1.bf16.msra.mxu0 %v884
    %974 = vmatprep.subr.bf16.mxu0 0
    %975 = vmatpush1.bf16.msra.mxu0 %v885
    %976 = vmatprep.subr.bf16.mxu0 0
    %977 = vmatpush1.bf16.msra.mxu0 %v886
    %978 = vmatprep.subr.bf16.mxu0 0
    %979 = vmatpush1.bf16.msra.mxu0 %v887
    %980 = vmatprep.subr.bf16.mxu0 0
    %981 = vmatpush1.bf16.msra.mxu0 %v888
    %982 = vmatprep.subr.bf16.mxu0 0
    %983 = vmatpush1.bf16.msra.mxu0 %v889
    %984 = vmatprep.subr.bf16.mxu0 0
    %985 = vmatpush1.bf16.msra.mxu0 %v890
    %986 = vmatprep.subr.bf16.mxu0 0
    %987 = vmatpush1.bf16.msra.mxu0 %v891
    %988 = vmatprep.subr.bf16.mxu0 0
    %989 = vmatpush1.bf16.msra.mxu0 %v892
    %990 = vmatprep.subr.bf16.mxu0 0
    %991 = vmatpush1.bf16.msra.mxu0 %v893
    %992 = vmatprep.subr.bf16.mxu0 0
    %993 = vmatpush1.bf16.msra.mxu0 %v894
    %994 = vmatprep.subr.bf16.mxu0 0
    %995 = vmatpush1.bf16.msra.mxu0 %v895
    %996 = vmatprep.subr.bf16.mxu0 0
    %997 = vmatpush1.bf16.msra.mxu0 %v896
    %998 = vmatprep.subr.bf16.mxu0 0
    %999 = vmatpush1.bf16.msra.mxu0 %v897
    %1000 = vmatprep.subr.bf16.mxu0 0
    %1001 = vmatpush1.bf16.msra.mxu0 %v898
    %1002 = vmatprep.subr.bf16.mxu0 0
    %1003 = vmatpush1.bf16.msra.mxu0 %v899
    %1004 = vmatprep.mubr.bf16.mxu0 %v668
    %1005 = vmatmul.mubr.bf16.gmra.mrb[0].mxu0 %v667
    %v1006 = vpop.f32.mrb[0].mxu0
    %v1007 = vadd.f32 %v967, %v1006
    %v1008 = vpop.f32.mrb[0].mxu0
    %v1009 = vpop.f32.mrb[0].mxu0
    %v1010 = vpop.f32.mrb[0].mxu0
    %1011 = vdwg.mxu0
    %1012 = vst [vmem:[#allocation10] sm:$0xf] %v1007
    // Predicated region
    $region46: #{tpu_custom_call.1} parent=1 // pred_check
      _
    $region47: #{tpu_custom_call.1} parent=1 // pred_check_branch
      %1014 = sbr.rel (0) target = $region49
    $region48: #{tpu_custom_call.1} parent=1 // pred_region
      %s1016 = ssub.s32 64, 64
      %1017 = vsyncadd [#allocation4], %s1016
      %s1019 = sshll.u32 [#allocation10], 4
      %s1020 = int_to_ptr.vmem [resolvable:$true] %s1019
      %1022 = dma.vmem_to_hbm [thread:$0]  %s1020, 64, %s7, [#allocation4]
    $region49: #{tpu_custom_call.1} parent=1 // pred_fallthru
      _
    // Predicated region
    $region50: #{tpu_custom_call.1} parent=1 // pred_check
      _
    $region51: #{tpu_custom_call.1} parent=1 // pred_check_branch
      %1024 = sbr.rel (0) target = $region53
    $region52: #{tpu_custom_call.1} parent=1 // pred_region
      %1025 = dma.done [#allocation4], 64
    $region53: #{tpu_custom_call.1} parent=1 // pred_fallthru
      _
    %1026 = vsyncpa [#allocation3], 1
    %1027 = vsyncpa [#allocation6], 1
    %1028 = vsyncpa [#allocation9], 1
    %1029 = vsyncpa [#allocation4], 1

</llo_original>
